<compile_context>
chip_gen: v5e
topology: v5e:2x2
jax: 0.10.0
libtpu: 0.0.40
codegen_flags: <defaults>
</compile_context>

<pallas_src>
import functools

import jax
import jax.numpy as jnp
from jax.experimental import pallas as pl
from jax.experimental.pallas import tpu as pltpu


def _mlp_kernel(x_ref, w1_ref, b1_ref, w2_ref, b2_ref, o_ref):
    # x: (10, TB), w1: (5, 10), b1: (5, 1), w2: (2, 5), b2: (2, 1), o: (2, TB)
    x = x_ref[...]
    h = jnp.dot(w1_ref[...], x, preferred_element_type=jnp.float32) + b1_ref[...]
    h = jnp.maximum(h, 0.0)  # ReLU
    y = jnp.dot(w2_ref[...], h, preferred_element_type=jnp.float32) + b2_ref[...]
    o_ref[...] = y.astype(o_ref.dtype)


def _round_up(n, m):
    return ((n + m - 1) // m) * m


def _cdiv(a, b):
    return -(-a // b)


def _plan_tiles(B, tile_b):
    """Return (TB, Bp, n_tiles) with TB a multiple of 128 and bounded padding."""
    # Guard: tile must be a multiple of 128 lanes (BlockSpec lane constraint).
    tile_b = max(128, _round_up(int(tile_b), 128))
    n_tiles = max(1, _cdiv(B, tile_b))
    # v7x megacore: give the "parallel" batch axis an even tile count >= 2
    # whenever the batch spans more than one 128-lane chunk.
    if B > 128 and n_tiles % 2 == 1:
        n_tiles += 1
    # Split B as evenly as possible across tiles -> padding <= 128 lanes/tile.
    TB = _round_up(_cdiv(B, n_tiles), 128)
    Bp = n_tiles * TB
    return TB, Bp, n_tiles


@functools.partial(jax.jit, static_argnames=("tile_b",))
def simple_model_forward(x, w1, b1, w2, b2, *, tile_b=65536):
    """x: (B, 10) f32; w1: (5, 10); b1: (5,); w2: (2, 5); b2: (2,) — PyTorch layout."""
    B, D_in = x.shape
    D_h = w1.shape[0]       # 5
    D_out = w2.shape[0]     # 2

    TB, Bp, n_tiles = _plan_tiles(B, tile_b)

    # Feature-major: batch on the lane axis. Transpose + pad fuse under jit.
    x_t = x.T                                   # (10, B)
    if Bp != B:
        x_t = jnp.pad(x_t, ((0, 0), (0, Bp - B)))
    b1_c = b1.reshape(D_h, 1)                   # (5, 1)
    b2_c = b2.reshape(D_out, 1)                 # (2, 1)

    # Per-tile VMEM: x (10 -> 16 sublanes) + out (2 -> 8 sublanes), double-buffered.
    tile_vmem = 4 * TB * (_round_up(D_in, 8) + _round_up(D_out, 8)) * 2
    vmem_limit = min(48 * 1024 * 1024, max(16 * 1024 * 1024, tile_vmem + (4 << 20)))

    cost = pl.CostEstimate(
        flops=2 * Bp * (D_in * D_h + D_h * D_out),
        transcendentals=0,
        bytes_accessed=4 * (Bp * (D_in + D_out)
                            + D_in * D_h + D_h * D_out + D_h + D_out),
    )

    out_t = pl.pallas_call(
        _mlp_kernel,
        out_shape=jax.ShapeDtypeStruct((D_out, Bp), jnp.float32),
        grid_spec=pl.GridSpec(
            grid=(n_tiles,),
            in_specs=[
                pl.BlockSpec((D_in, TB), lambda i: (0, i)),    # x tile, pipelined
                pl.BlockSpec((D_h, D_in), lambda i: (0, 0)),   # W1 resident
                pl.BlockSpec((D_h, 1), lambda i: (0, 0)),      # b1 resident
                pl.BlockSpec((D_out, D_h), lambda i: (0, 0)),  # W2 resident
                pl.BlockSpec((D_out, 1), lambda i: (0, 0)),    # b2 resident
            ],
            out_specs=pl.BlockSpec((D_out, TB), lambda i: (0, i)),
        ),
        compiler_params=pltpu.CompilerParams(
            dimension_semantics=("parallel",),
            vmem_limit_bytes=int(vmem_limit),
        ),
        cost_estimate=cost,
    )(x_t, w1, b1_c, w2, b2_c)

    # (2, Bp) -> (B, 2); slice + transpose fuse under jit.
    return out_t[:, :B].T


def _init_params(key):
    """Deterministic init matching nn.Linear shapes (Kaiming-uniform style bounds)."""
    k1, k2, k3, k4 = jax.random.split(key, 4)
    bound1 = 1.0 / jnp.sqrt(10.0)
    bound2 = 1.0 / jnp.sqrt(5.0)
    w1 = jax.random.uniform(k1, (5, 10), jnp.float32, -bound1, bound1)
    b1 = jax.random.uniform(k2, (5,), jnp.float32, -bound1, bound1)
    w2 = jax.random.uniform(k3, (2, 5), jnp.float32, -bound2, bound2)
    b2 = jax.random.uniform(k4, (2,), jnp.float32, -bound2, bound2)
    return w1, b1, w2, b2


if __name__ == "__main__":
    key = jax.random.PRNGKey(0)
    kx, kp = jax.random.split(key)

    w1, b1, w2, b2 = _init_params(kp)

    # Small batch (single tile, padded to 128 lanes).
    B = 8
    x = jax.random.normal(kx, (B, 10), jnp.float32)
    y = simple_model_forward(x, w1, b1, w2, b2)
    jax.block_until_ready(y)
    ref = jnp.maximum(x @ w1.T + b1, 0.0) @ w2.T + b2
    assert y.shape == (B, 2)
    assert jnp.allclose(y, ref, atol=1e-5, rtol=1e-5)

    # Non-tile-aligned, multi-tile batch (exercises even tile count + padding).
    B2 = 300
    x2 = jax.random.normal(kx, (B2, 10), jnp.float32)
    y2 = simple_model_forward(x2, w1, b1, w2, b2, tile_b=128)
    jax.block_until_ready(y2)
    ref2 = jnp.maximum(x2 @ w1.T + b1, 0.0) @ w2.T + b2
    assert y2.shape == (B2, 2)
    assert jnp.allclose(y2, ref2, atol=1e-5, rtol=1e-5)

    # Default (large) tile path with a moderately sized batch.
    B3 = 1000
    x3 = jax.random.normal(kx, (B3, 10), jnp.float32)
    y3 = simple_model_forward(x3, w1, b1, w2, b2)
    jax.block_until_ready(y3)
    ref3 = jnp.maximum(x3 @ w1.T + b1, 0.0) @ w2.T + b2
    assert y3.shape == (B3, 2)
    assert jnp.allclose(y3, ref3, atol=1e-5, rtol=1e-5)

    print("KERNEL_OK")
</pallas_src>

<mosaic_0001>
module attributes {stable_mosaic.version = 11 : i64} {
  func.func @_mlp_kernel(%arg0: i32, %arg1: memref<10x128xf32, #tpu.memory_space<vmem>>, %arg2: memref<5x10xf32, #tpu.memory_space<vmem>>, %arg3: memref<5x1xf32, #tpu.memory_space<vmem>>, %arg4: memref<2x5xf32, #tpu.memory_space<vmem>>, %arg5: memref<2x1xf32, #tpu.memory_space<vmem>>, %arg6: memref<2x128xf32, #tpu.memory_space<vmem>>) attributes {dimension_semantics = [#tpu.dimension_semantics<parallel>], iteration_bounds = array<i64: 1>, scalar_prefetch = 0 : i64, scratch_operands = 0 : i64, tpu.core_type = #tpu.core_type<tc>, window_params = [{transform_indices = @transform_0, window_bounds = array<i64: 10, 128>}, {pipeline_mode = #tpu.pipeline_mode<synchronous>, transform_indices = @transform_1, window_bounds = array<i64: 5, 10>}, {pipeline_mode = #tpu.pipeline_mode<synchronous>, transform_indices = @transform_2, window_bounds = array<i64: 5, 1>}, {pipeline_mode = #tpu.pipeline_mode<synchronous>, transform_indices = @transform_3, window_bounds = array<i64: 2, 5>}, {pipeline_mode = #tpu.pipeline_mode<synchronous>, transform_indices = @transform_4, window_bounds = array<i64: 2, 1>}, {transform_indices = @transform_5, window_bounds = array<i64: 2, 128>}]} {
    %c0 = arith.constant 0 : index
    %c0_0 = arith.constant 0 : index
    %0 = vector.load %arg1[%c0, %c0_0] : memref<10x128xf32, #tpu.memory_space<vmem>>, vector<10x128xf32>
    %c0_1 = arith.constant 0 : index
    %c0_2 = arith.constant 0 : index
    %1 = vector.load %arg2[%c0_1, %c0_2] : memref<5x10xf32, #tpu.memory_space<vmem>>, vector<5x10xf32>
    %cst = arith.constant dense<0.000000e+00> : vector<5x128xf32>
    %2 = tpu.matmul %1, %0, %cst {dimension_numbers = #tpu.dot_dimension_numbers<[1], [0], [0], [1], [0, 0, 1, 1], [], []>} : vector<5x10xf32>, vector<10x128xf32>, vector<5x128xf32> -> vector<5x128xf32>
    %c0_3 = arith.constant 0 : index
    %c0_4 = arith.constant 0 : index
    %3 = vector.load %arg3[%c0_3, %c0_4] : memref<5x1xf32, #tpu.memory_space<vmem>>, vector<5x1xf32>
    %4 = vector.broadcast %3 : vector<5x1xf32> to vector<5x128xf32>
    %5 = arith.addf %2, %4 : vector<5x128xf32>
    %cst_5 = arith.constant 0.000000e+00 : f32
    %6 = vector.broadcast %cst_5 : f32 to vector<5x128xf32>
    %7 = arith.maximumf %5, %6 : vector<5x128xf32>
    %c0_6 = arith.constant 0 : index
    %c0_7 = arith.constant 0 : index
    %8 = vector.load %arg4[%c0_6, %c0_7] : memref<2x5xf32, #tpu.memory_space<vmem>>, vector<2x5xf32>
    %cst_8 = arith.constant dense<0.000000e+00> : vector<2x128xf32>
    %9 = tpu.matmul %8, %7, %cst_8 {dimension_numbers = #tpu.dot_dimension_numbers<[1], [0], [0], [1], [0, 0, 1, 1], [], []>} : vector<2x5xf32>, vector<5x128xf32>, vector<2x128xf32> -> vector<2x128xf32>
    %c0_9 = arith.constant 0 : index
    %c0_10 = arith.constant 0 : index
    %10 = vector.load %arg5[%c0_9, %c0_10] : memref<2x1xf32, #tpu.memory_space<vmem>>, vector<2x1xf32>
    %11 = vector.broadcast %10 : vector<2x1xf32> to vector<2x128xf32>
    %12 = arith.addf %9, %11 : vector<2x128xf32>
    %c0_11 = arith.constant 0 : index
    %c0_12 = arith.constant 0 : index
    %13 = vector.load %arg6[%c0_11, %c0_12] : memref<2x128xf32, #tpu.memory_space<vmem>>, vector<2x128xf32>
    tpu.vector_store %arg6[%c0_11, %c0_12], %12 {strides = array<i32>} : memref<2x128xf32, #tpu.memory_space<vmem>>, vector<2x128xf32>,
    return
  }
  func.func @transform_0(%arg0: i32) -> (i32, i32) {
    %c0_i32 = arith.constant 0 : i32
    %c0_i32_0 = arith.constant 0 : i32
    return %c0_i32, %arg0 : i32, i32
  }
  func.func @transform_1(%arg0: i32) -> (i32, i32) {
    %c0_i32 = arith.constant 0 : i32
    %c0_i32_0 = arith.constant 0 : i32
    %c0_i32_1 = arith.constant 0 : i32
    return %c0_i32, %c0_i32_0 : i32, i32
  }
  func.func @transform_2(%arg0: i32) -> (i32, i32) {
    %c0_i32 = arith.constant 0 : i32
    %c0_i32_0 = arith.constant 0 : i32
    %c0_i32_1 = arith.constant 0 : i32
    return %c0_i32, %c0_i32_0 : i32, i32
  }
  func.func @transform_3(%arg0: i32) -> (i32, i32) {
    %c0_i32 = arith.constant 0 : i32
    %c0_i32_0 = arith.constant 0 : i32
    %c0_i32_1 = arith.constant 0 : i32
    return %c0_i32, %c0_i32_0 : i32, i32
  }
  func.func @transform_4(%arg0: i32) -> (i32, i32) {
    %c0_i32 = arith.constant 0 : i32
    %c0_i32_0 = arith.constant 0 : i32
    %c0_i32_1 = arith.constant 0 : i32
    return %c0_i32, %c0_i32_0 : i32, i32
  }
  func.func @transform_5(%arg0: i32) -> (i32, i32) {
    %c0_i32 = arith.constant 0 : i32
    %c0_i32_0 = arith.constant 0 : i32
    return %c0_i32, %arg0 : i32, i32
  }
}

</mosaic_0001>

<llo_original>
// kernel: simple_model_forward.1
$region0: #{simple_model_forward.1}
  #allocation0 [shape = 'u32[]', space=smem, size = 0x4, offset = 0x4, fixed_abs, tag = 'smem constant byte address 0x4 - core index']
  #allocation1 [shape = 'u32[72,128]{1,0:T(1,128)}', space=vmem, size = 0x9000, scoped, tag = 'internal scratch']
  %s0 = inlined_call_operand.vmem [shape: f32[10,128], index: 0, kind: input, shape index: {}]
  %s1 = inlined_call_operand.vmem [shape: f32[5,10], index: 1, kind: input, shape index: {}]
  %s2 = inlined_call_operand.vmem [shape: f32[5,1], index: 2, kind: input, shape index: {}]
  %s3 = inlined_call_operand.vmem [shape: f32[2,5], index: 3, kind: input, shape index: {}]
  %s4 = inlined_call_operand.vmem [shape: f32[2,1], index: 4, kind: input, shape index: {}]
  %s5 = inlined_call_operand.vmem [shape: f32[2,128], index: 5, kind: output, shape index: {}]
  %s6 = sld [smem:[#allocation0]]
  $region30: #{simple_model_forward.1} parent=0
    _
  %s8 = ssub.s32 1, %s6
  %s9 = scalar_select 0, %s8, %s6
  // Predicated region
  $region2: #{simple_model_forward.1} parent=0 // pred_check
    _
  $region3: #{simple_model_forward.1} parent=0 // pred_check_branch
    %11 = sbr.rel (0) target = $region5
  $region4: #{simple_model_forward.1} parent=0 // pred_region
    _
  $region5: #{simple_model_forward.1} parent=0 // pred_fallthru
    _
  // Predicated region
  $region6: #{simple_model_forward.1} parent=0 // pred_check
    _
  $region7: #{simple_model_forward.1} parent=0 // pred_check_branch
    %13 = sbr.rel (0) target = $region9
  $region8: #{simple_model_forward.1} parent=0 // pred_region
    _
  $region9: #{simple_model_forward.1} parent=0 // pred_fallthru
    _
  // Predicated region
  $region10: #{simple_model_forward.1} parent=0 // pred_check
    _
  $region11: #{simple_model_forward.1} parent=0 // pred_check_branch
    %15 = sbr.rel (0) target = $region13
  $region12: #{simple_model_forward.1} parent=0 // pred_region
    _
  $region13: #{simple_model_forward.1} parent=0 // pred_fallthru
    _
  // Predicated region
  $region14: #{simple_model_forward.1} parent=0 // pred_check
    _
  $region15: #{simple_model_forward.1} parent=0 // pred_check_branch
    %17 = sbr.rel (0) target = $region17
  $region16: #{simple_model_forward.1} parent=0 // pred_region
    _
  $region17: #{simple_model_forward.1} parent=0 // pred_fallthru
    _
  // Predicated region
  $region18: #{simple_model_forward.1} parent=0 // pred_check
    _
  $region19: #{simple_model_forward.1} parent=0 // pred_check_branch
    %19 = sbr.rel (0) target = $region21
  $region20: #{simple_model_forward.1} parent=0 // pred_region
    _
  $region21: #{simple_model_forward.1} parent=0 // pred_fallthru
    _
  %v20 = vld [vmem:[%s0] sm:$0xff]
  %v21 = vld [vmem:[%s0 + $0x8] sm:$0x3]
  %v22 = vld [vmem:[%s1] sm:$0x1f]
  %v23 = vld [vmem:[%s2] sm:$0x1f]
  %25 = vset.pattern.permute.xlu0 0
  %26 = vperm.xlu0 %25, %v23
  %v27 = vpop.permute.xlu0 %26
  %vm29 = vcmask 80896
  %v31 = vsel %vm29, %v22, 0
  %vm33 = vcmask 1041408
  %v35 = vsel %vm33, %v21, 0
  %37 = vmatpush.msra.mxu0 0.0
  %38 = vmatpush.msra.mxu0 0.0
  %39 = vmatpush.msra.mxu0 0.0
  %40 = vmatpush.msra.mxu0 0.0
  %41 = vmatpush.msra.mxu0 0.0
  %42 = vmatpush.msra.mxu0 0.0
  %43 = vmatpush.msra.mxu0 0.0
  %44 = vmatpush.msra.mxu0 0.0
  %45 = vmatpush.msra.mxu0 0.0
  %46 = vmatpush.msra.mxu0 0.0
  %47 = vmatpush.msra.mxu0 0.0
  %48 = vmatpush.msra.mxu0 0.0
  %49 = vmatpush.msra.mxu0 0.0
  %50 = vmatpush.msra.mxu0 0.0
  %51 = vmatpush.msra.mxu0 %v35
  %52 = vmatpush.msra.mxu0 %v20
  %53 = vmatmul.f32.gmra.mxu0 %v31
  %v54 = vpop.f32.mrf.mxu0
  %v55 = vadd.f32 %v27, %v54
  %56 = vdwg.mxu0
  %v57 = vmax.f32 %v55, 0.0
  %v58 = vld [vmem:[%s3] sm:$0x3]
  %v59 = vld [vmem:[%s4] sm:$0x3]
  %61 = vset.pattern.permute.xlu0 0
  %62 = vperm.xlu0 %61, %v59
  %v63 = vpop.permute.xlu0 %62
  %vm65 = vcmask 39936
  %v67 = vsel %vm65, %v58, 0
  %vm69 = vcmask 1044480
  %v71 = vsel %vm69, %v57, 0
  %73 = vmatpush.msra.mxu0 0.0
  %74 = vmatpush.msra.mxu0 0.0
  %75 = vmatpush.msra.mxu0 0.0
  %76 = vmatpush.msra.mxu0 0.0
  %77 = vmatpush.msra.mxu0 0.0
  %78 = vmatpush.msra.mxu0 0.0
  %79 = vmatpush.msra.mxu0 0.0
  %80 = vmatpush.msra.mxu0 0.0
  %81 = vmatpush.msra.mxu0 0.0
  %82 = vmatpush.msra.mxu0 0.0
  %83 = vmatpush.msra.mxu0 0.0
  %84 = vmatpush.msra.mxu0 0.0
  %85 = vmatpush.msra.mxu0 0.0
  %86 = vmatpush.msra.mxu0 0.0
  %87 = vmatpush.msra.mxu0 0.0
  %88 = vmatpush.msra.mxu0 %v71
  %89 = vmatmul.f32.gmra.mxu0 %v67
  %v90 = vpop.f32.mrf.mxu0
  %v91 = vadd.f32 %v63, %v90
  %92 = vdwg.mxu0
  %93 = vst [vmem:[%s5] sm:$0x3] %v91
  // Predicated region
  $region22: #{simple_model_forward.1} parent=0 // pred_check
    _
  $region23: #{simple_model_forward.1} parent=0 // pred_check_branch
    %95 = sbr.rel (0) target = $region25
  $region24: #{simple_model_forward.1} parent=0 // pred_region
    _
  $region25: #{simple_model_forward.1} parent=0 // pred_fallthru
    _
  // Predicated region
  $region26: #{simple_model_forward.1} parent=0 // pred_check
    _
  $region27: #{simple_model_forward.1} parent=0 // pred_check_branch
    %97 = sbr.rel (0) target = $region29
  $region28: #{simple_model_forward.1} parent=0 // pred_region
    _
  $region29: #{simple_model_forward.1} parent=0 // pred_fallthru
    _

</llo_original>
